<compile_context>
chip_gen: v6e
topology: v6e:2x2x1
jax: 0.10.0
libtpu: 0.0.40
codegen_flags: <defaults>
</compile_context>

<pallas_src>
import functools

import jax
import jax.numpy as jnp
from jax.experimental import pallas as pl
from jax.experimental.pallas import tpu as pltpu


def _round_up(x, m):
    return ((x + m - 1) // m) * m


def _gelu_exact_f32(h):
    # Exact (erf-based) GELU -> matches torch.nn.GELU() default.
    return 0.5 * h * (1.0 + jax.lax.erf(h * jnp.float32(0.7071067811865476)))


def _gelu_tanh_f32(h):
    # tanh-approximate GELU: transcendental runs on the EUP slot instead of a VPU erf chain.
    c = jnp.float32(0.7978845608028654)  # sqrt(2/pi)
    return 0.5 * h * (1.0 + jnp.tanh(c * (h + jnp.float32(0.044715) * (h * h * h))))


def _apply_gelu(h, approximate_gelu):
    return _gelu_tanh_f32(h) if approximate_gelu else _gelu_exact_f32(h)


def _mlp_kernel_fused(x_ref, w1_ref, b1_ref, w2_ref, b2_ref, o_ref,
                      *, approximate_gelu, matmul_dtype):
    # x_ref:  (tm, C_in)   original dtype (cast to bf16 here, on the VPU)
    # w1_ref: (C_in, H)    bf16 (VMEM-resident; constant index map across the row grid)
    # b1_ref: (1, H)       f32
    # w2_ref: (H, C_out)   bf16 (VMEM-resident)
    # b2_ref: (1, C_out)   f32
    x = x_ref[...].astype(matmul_dtype)
    h = jnp.dot(x, w1_ref[...], preferred_element_type=jnp.float32)
    h = _apply_gelu(h + b1_ref[...], approximate_gelu)
    y = jnp.dot(h.astype(matmul_dtype), w2_ref[...], preferred_element_type=jnp.float32)
    o_ref[...] = (y + b2_ref[...]).astype(o_ref.dtype)


def _mlp_kernel_chunked(x_ref, w1_ref, b1_ref, w2_ref, b2_ref, o_ref, acc_ref,
                        *, approximate_gelu, matmul_dtype):
    # Fallback for H too large for resident weights: accumulate fc2 partials over hidden chunks.
    hk = pl.program_id(1)

    @pl.when(hk == 0)
    def _init():
        acc_ref[...] = jnp.zeros_like(acc_ref)

    x = x_ref[...].astype(matmul_dtype)
    h = jnp.dot(x, w1_ref[...], preferred_element_type=jnp.float32)
    h = _apply_gelu(h + b1_ref[...], approximate_gelu)
    acc_ref[...] += jnp.dot(h.astype(matmul_dtype), w2_ref[...],
                            preferred_element_type=jnp.float32)

    @pl.when(hk == pl.num_programs(1) - 1)
    def _finalize():
        o_ref[...] = (acc_ref[...] + b2_ref[...]).astype(o_ref.dtype)


def _fused_vmem_estimate(tm, C_in, H, C_out, x_itemsize, out_itemsize, w_itemsize):
    weights = (C_in * H + H * C_out) * w_itemsize * 2        # conservatively double-buffered
    biases = (H + C_out) * 4 * 2
    x_tile = tm * C_in * x_itemsize * 2
    o_tile = tm * C_out * out_itemsize * 2
    inter = tm * H * (4 + w_itemsize) + tm * C_out * 4        # f32 h + bf16 h + f32 y
    return weights + biases + x_tile + o_tile + inter


def mlp_pallas(x, w1, b1, w2, b2, *, tm=512, hidden_tile=None,
               approximate_gelu=False, matmul_dtype=jnp.bfloat16,
               vmem_limit_bytes=48 * 1024 * 1024):
    """x: (B, N, C_in) -> (B, N, C_out). Weights stored as (in, out); biases as (out,).

    For v6e/v5e (128 MiB VMEM) tm=1024 is a reasonable override; the 512 default is sized
    for v7x's 64 MiB per-core VMEM.
    """
    B, N, C_in = x.shape
    H = w1.shape[1]
    C_out = w2.shape[1]
    M = B * N
    out_dtype = x.dtype

    # Row tiling: clamp to the (8-padded) row count for small inputs; otherwise snap to a
    # multiple of 128 so the MXU systolic array is fully fed (matters most on v5e).
    tm = max(8, min(int(tm), _round_up(M, 8)))
    if tm >= 128:
        tm = (tm // 128) * 128
    else:
        tm = _round_up(tm, 8)
    m_pad = _round_up(M, tm)

    x2d = x.reshape(M, C_in)
    if m_pad != M:
        # Zero rows -> finite bias/GELU garbage that is sliced off below.
        x2d = jnp.pad(x2d, ((0, m_pad - M), (0, 0)))
    w1c = w1.astype(matmul_dtype)   # no-op per call if the model stores bf16 weights
    w2c = w2.astype(matmul_dtype)
    b1r = b1.reshape(1, H).astype(jnp.float32)
    b2r = b2.reshape(1, C_out).astype(jnp.float32)

    w_itemsize = jnp.dtype(matmul_dtype).itemsize
    est = _fused_vmem_estimate(tm, C_in, H, C_out,
                               x2d.dtype.itemsize, jnp.dtype(out_dtype).itemsize, w_itemsize)
    fused = est <= int(0.9 * vmem_limit_bytes)

    # Pick a hidden chunk for the fallback path (multiple of 128 that divides H).
    th = H
    if not fused:
        budget = hidden_tile if hidden_tile is not None else 1024
        start = (min(int(budget), H) // 128) * 128
        for cand in range(start, 0, -128):
            if H % cand == 0:
                th = cand
                break
        if th == H:          # no valid chunk found -> fall back to the fused path anyway
            fused = True

    if fused:
        kernel = functools.partial(_mlp_kernel_fused,
                                   approximate_gelu=approximate_gelu,
                                   matmul_dtype=matmul_dtype)
        grid_spec = pltpu.PrefetchScalarGridSpec(
            num_scalar_prefetch=0,
            grid=(m_pad // tm,),
            in_specs=[
                pl.BlockSpec((tm, C_in), lambda i: (i, 0)),
                pl.BlockSpec((C_in, H), lambda i: (0, 0)),    # constant -> VMEM-resident
                pl.BlockSpec((1, H), lambda i: (0, 0)),
                pl.BlockSpec((H, C_out), lambda i: (0, 0)),   # constant -> VMEM-resident
                pl.BlockSpec((1, C_out), lambda i: (0, 0)),
            ],
            out_specs=pl.BlockSpec((tm, C_out), lambda i: (i, 0)),
            scratch_shapes=[],
        )
        dim_sem = ("parallel",)
    else:
        n_h = H // th
        kernel = functools.partial(_mlp_kernel_chunked,
                                   approximate_gelu=approximate_gelu,
                                   matmul_dtype=matmul_dtype)
        grid_spec = pltpu.PrefetchScalarGridSpec(
            num_scalar_prefetch=0,
            grid=(m_pad // tm, n_h),
            in_specs=[
                pl.BlockSpec((tm, C_in), lambda i, hk: (i, 0)),
                pl.BlockSpec((C_in, th), lambda i, hk: (0, hk)),
                pl.BlockSpec((1, th), lambda i, hk: (0, hk)),
                pl.BlockSpec((th, C_out), lambda i, hk: (hk, 0)),
                pl.BlockSpec((1, C_out), lambda i, hk: (0, 0)),
            ],
            out_specs=pl.BlockSpec((tm, C_out), lambda i, hk: (i, 0)),
            scratch_shapes=[pltpu.VMEM((tm, C_out), jnp.float32)],
        )
        dim_sem = ("parallel", "arbitrary")

    out2d = pl.pallas_call(
        kernel,
        out_shape=jax.ShapeDtypeStruct((m_pad, C_out), out_dtype),
        grid_spec=grid_spec,
        compiler_params=pltpu.CompilerParams(
            dimension_semantics=dim_sem,
            vmem_limit_bytes=int(vmem_limit_bytes),
        ),
    )(x2d, w1c, b1r, w2c, b2r)

    # TODO(synk): dropout is a no-op at p=0.0 (module default); p>0 not implemented.
    return out2d[:M].reshape(B, N, C_out)


def _reference_mlp(x, w1, b1, w2, b2, *, matmul_dtype=jnp.float32):
    """Pure-JAX reference. matmul_dtype=bf16 mirrors the kernel's precision exactly."""
    M, C_in = x.shape[0] * x.shape[1], x.shape[2]
    xd = x.reshape(M, C_in).astype(matmul_dtype)
    h = jnp.dot(xd, w1.astype(matmul_dtype), preferred_element_type=jnp.float32)
    h = h + b1.astype(jnp.float32)
    h = _gelu_exact_f32(h)
    y = jnp.dot(h.astype(matmul_dtype), w2.astype(matmul_dtype),
                preferred_element_type=jnp.float32)
    y = y + b2.astype(jnp.float32)
    return y.reshape(x.shape[0], x.shape[1], w2.shape[1]).astype(x.dtype)


if __name__ == "__main__":
    key = jax.random.PRNGKey(0)
    B, N = 2, 13                  # B*N = 26 rows -> exercises the padded-row-tail path
    in_features = 128             # lane-dense feature dims (multiples of 128)
    hidden_features = 256
    out_features = 128            # out_features defaults to in_features in the module

    k_x, k_w1, k_b1, k_w2, k_b2 = jax.random.split(key, 5)
    x = jax.random.normal(k_x, (B, N, in_features), dtype=jnp.float32)
    # nn.Linear weights are (out, in); stored transposed here as (in, out) for row-major matmul.
    w1 = jax.random.normal(k_w1, (in_features, hidden_features), jnp.float32) * 0.05
    b1 = jax.random.normal(k_b1, (hidden_features,), jnp.float32) * 0.01
    w2 = jax.random.normal(k_w2, (hidden_features, out_features), jnp.float32) * 0.05
    b2 = jax.random.normal(k_b2, (out_features,), jnp.float32) * 0.01

    out = jax.block_until_ready(mlp_pallas(x, w1, b1, w2, b2))
    assert out.shape == (B, N, out_features)

    # Check vs. a reference that mirrors the kernel's bf16-matmul / f32-accumulate precision.
    ref_bf16 = _reference_mlp(x, w1, b1, w2, b2, matmul_dtype=jnp.bfloat16)
    assert jnp.allclose(out, ref_bf16, atol=1e-3, rtol=1e-3), "mismatch vs bf16-precision reference"

    # Check vs. the full-f32 module semantics (loose tolerance due to bf16 MXU inputs).
    ref_f32 = _reference_mlp(x, w1, b1, w2, b2, matmul_dtype=jnp.float32)
    assert jnp.allclose(out, ref_f32, atol=3e-2, rtol=3e-2), "mismatch vs f32 reference"

    print("KERNEL_OK")
</pallas_src>

<mosaic_0001>
module attributes {stable_mosaic.version = 11 : i64} {
  func.func @_mlp_kernel_fused(%arg0: i32, %arg1: memref<32x128xf32, #tpu.memory_space<vmem>>, %arg2: memref<128x256xbf16, #tpu.memory_space<vmem>>, %arg3: memref<1x256xf32, #tpu.memory_space<vmem>>, %arg4: memref<256x128xbf16, #tpu.memory_space<vmem>>, %arg5: memref<1x128xf32, #tpu.memory_space<vmem>>, %arg6: memref<32x128xf32, #tpu.memory_space<vmem>>) attributes {dimension_semantics = [#tpu.dimension_semantics<parallel>], iteration_bounds = array<i64: 1>, scalar_prefetch = 0 : i64, scratch_operands = 0 : i64, tpu.core_type = #tpu.core_type<tc>, window_params = [{transform_indices = @transform_0, window_bounds = array<i64: 32, 128>}, {pipeline_mode = #tpu.pipeline_mode<synchronous>, transform_indices = @transform_1, window_bounds = array<i64: 128, 256>}, {pipeline_mode = #tpu.pipeline_mode<synchronous>, transform_indices = @transform_2, window_bounds = array<i64: 1, 256>}, {pipeline_mode = #tpu.pipeline_mode<synchronous>, transform_indices = @transform_3, window_bounds = array<i64: 256, 128>}, {pipeline_mode = #tpu.pipeline_mode<synchronous>, transform_indices = @transform_4, window_bounds = array<i64: 1, 128>}, {transform_indices = @transform_5, window_bounds = array<i64: 32, 128>}]} {
    %c0 = arith.constant 0 : index
    %c0_0 = arith.constant 0 : index
    %0 = vector.load %arg1[%c0, %c0_0] : memref<32x128xf32, #tpu.memory_space<vmem>>, vector<32x128xf32>
    %1 = arith.truncf %0 : vector<32x128xf32> to vector<32x128xbf16>
    %c0_1 = arith.constant 0 : index
    %c0_2 = arith.constant 0 : index
    %2 = vector.load %arg2[%c0_1, %c0_2] : memref<128x256xbf16, #tpu.memory_space<vmem>>, vector<128x256xbf16>
    %cst = arith.constant dense<0.000000e+00> : vector<32x256xf32>
    %3 = tpu.matmul %1, %2, %cst {dimension_numbers = #tpu.dot_dimension_numbers<[1], [0], [0], [1], [0, 0, 1, 1], [], []>} : vector<32x128xbf16>, vector<128x256xbf16>, vector<32x256xf32> -> vector<32x256xf32>
    %c0_3 = arith.constant 0 : index
    %c0_4 = arith.constant 0 : index
    %4 = vector.load %arg3[%c0_3, %c0_4] : memref<1x256xf32, #tpu.memory_space<vmem>>, vector<1x256xf32>
    %5 = vector.broadcast %4 : vector<1x256xf32> to vector<32x256xf32>
    %6 = arith.addf %3, %5 : vector<32x256xf32>
    %cst_5 = arith.constant 5.000000e-01 : f32
    %7 = vector.broadcast %cst_5 : f32 to vector<32x256xf32>
    %8 = arith.mulf %7, %6 : vector<32x256xf32>
    %cst_6 = arith.constant 0.707106769 : f32
    %9 = vector.broadcast %cst_6 : f32 to vector<32x256xf32>
    %10 = arith.mulf %6, %9 : vector<32x256xf32>
    %11 = math.erf %10 : vector<32x256xf32>
    %cst_7 = arith.constant 1.000000e+00 : f32
    %12 = vector.broadcast %cst_7 : f32 to vector<32x256xf32>
    %13 = arith.addf %12, %11 : vector<32x256xf32>
    %14 = arith.mulf %8, %13 : vector<32x256xf32>
    %15 = arith.truncf %14 : vector<32x256xf32> to vector<32x256xbf16>
    %c0_8 = arith.constant 0 : index
    %c0_9 = arith.constant 0 : index
    %16 = vector.load %arg4[%c0_8, %c0_9] : memref<256x128xbf16, #tpu.memory_space<vmem>>, vector<256x128xbf16>
    %cst_10 = arith.constant dense<0.000000e+00> : vector<32x128xf32>
    %17 = tpu.matmul %15, %16, %cst_10 {dimension_numbers = #tpu.dot_dimension_numbers<[1], [0], [0], [1], [0, 0, 1, 1], [], []>} : vector<32x256xbf16>, vector<256x128xbf16>, vector<32x128xf32> -> vector<32x128xf32>
    %c0_11 = arith.constant 0 : index
    %c0_12 = arith.constant 0 : index
    %18 = vector.load %arg5[%c0_11, %c0_12] : memref<1x128xf32, #tpu.memory_space<vmem>>, vector<1x128xf32>
    %19 = vector.broadcast %18 : vector<1x128xf32> to vector<32x128xf32>
    %20 = arith.addf %17, %19 : vector<32x128xf32>
    %c0_13 = arith.constant 0 : index
    %c0_14 = arith.constant 0 : index
    %21 = vector.load %arg6[%c0_13, %c0_14] : memref<32x128xf32, #tpu.memory_space<vmem>>, vector<32x128xf32>
    tpu.vector_store %arg6[%c0_13, %c0_14], %20 {strides = array<i32>} : memref<32x128xf32, #tpu.memory_space<vmem>>, vector<32x128xf32>,
    return
  }
  func.func @transform_0(%arg0: i32) -> (i32, i32) {
    %c0_i32 = arith.constant 0 : i32
    %c0_i32_0 = arith.constant 0 : i32
    return %arg0, %c0_i32 : i32, i32
  }
  func.func @transform_1(%arg0: i32) -> (i32, i32) {
    %c0_i32 = arith.constant 0 : i32
    %c0_i32_0 = arith.constant 0 : i32
    %c0_i32_1 = arith.constant 0 : i32
    return %c0_i32, %c0_i32_0 : i32, i32
  }
  func.func @transform_2(%arg0: i32) -> (i32, i32) {
    %c0_i32 = arith.constant 0 : i32
    %c0_i32_0 = arith.constant 0 : i32
    %c0_i32_1 = arith.constant 0 : i32
    return %c0_i32, %c0_i32_0 : i32, i32
  }
  func.func @transform_3(%arg0: i32) -> (i32, i32) {
    %c0_i32 = arith.constant 0 : i32
    %c0_i32_0 = arith.constant 0 : i32
    %c0_i32_1 = arith.constant 0 : i32
    return %c0_i32, %c0_i32_0 : i32, i32
  }
  func.func @transform_4(%arg0: i32) -> (i32, i32) {
    %c0_i32 = arith.constant 0 : i32
    %c0_i32_0 = arith.constant 0 : i32
    %c0_i32_1 = arith.constant 0 : i32
    return %c0_i32, %c0_i32_0 : i32, i32
  }
  func.func @transform_5(%arg0: i32) -> (i32, i32) {
    %c0_i32 = arith.constant 0 : i32
    %c0_i32_0 = arith.constant 0 : i32
    return %arg0, %c0_i32 : i32, i32
  }
}

</mosaic_0001>

<llo_original>
// kernel: tpu_custom_call.1
$region0: #{tpu_custom_call.1}
  #allocation0 [shape = 'u32[]', space=smem, size = 0x4, offset = 0x4, fixed_abs, tag = 'smem constant byte address 0x4 - core index']
  #allocation1 [shape = 'u32[144,128]{1,0:T(1,128)}', space=vmem, size = 0x12000, scoped, tag = 'internal scratch']
  %s0 = inlined_call_operand.hbm [shape: f32[32,128], index: 0, kind: input, shape index: {}]
  %s1 = inlined_call_operand.hbm [shape: bf16[128,256], index: 1, kind: input, shape index: {}]
  %s2 = inlined_call_operand.vmem [shape: f32[1,256], index: 2, kind: input, shape index: {}]
  %s3 = inlined_call_operand.hbm [shape: bf16[256,128], index: 3, kind: input, shape index: {}]
  %s4 = inlined_call_operand.vmem [shape: f32[1,128], index: 4, kind: input, shape index: {}]
  %s5 = inlined_call_operand.hbm [shape: f32[32,128], index: 5, kind: output, shape index: {}]
  %s6 = sld [smem:[#allocation0]]
  $region42: #{tpu_custom_call.1} parent=0
    _
  %s8 = ssub.s32 1, %s6
  %s9 = scalar_select 0, %s8, %s6
  $region1: #{tpu_custom_call.1} parent=0
    #allocation2 [shape = 'u8[16384]{0}', space=vmem, size = 0x4000, scoped, tag = 'input window, operand 0, single buffered']
    #allocation3 [shape = 's32[1]{0}', space=sflag, size = 0x4, scoped, tag = 'scoped memory for tpu_custom_call.1']
    #allocation4 [shape = 's32[1]{0}', space=sflag, size = 0x4, scoped, tag = 'scoped memory for tpu_custom_call.1']
    #allocation5 [shape = 'u8[65536]{0}', space=vmem, size = 0x10000, scoped, tag = 'input window, operand 1, single buffered']
    #allocation6 [shape = 's32[1]{0}', space=sflag, size = 0x4, scoped, tag = 'scoped memory for tpu_custom_call.1']
    #allocation7 [shape = 'u8[65536]{0}', space=vmem, size = 0x10000, scoped, tag = 'input window, operand 3, single buffered']
    #allocation8 [shape = 'u8[16384]{0}', space=vmem, size = 0x4000, scoped, tag = 'output window, operand 0, single buffered']
    %10 = vsyncpa [#allocation3], 0
    %11 = vsyncpa [#allocation6], 0
    %12 = vsyncpa [#allocation4], 0
    // Predicated region
    $region2: #{tpu_custom_call.1} parent=1 // pred_check
      _
    $region3: #{tpu_custom_call.1} parent=1 // pred_check_branch
      %14 = sbr.rel (0) target = $region5
    $region4: #{tpu_custom_call.1} parent=1 // pred_region
      %s16 = ssub.s32 512, 512
      %17 = vsyncadd [#allocation3], %s16
      %s18 = sshll.u32 [#allocation2], 4
      %s19 = int_to_ptr.vmem [resolvable:$true] %s18
      %24 = dma.hbm_to_vmem [thread:$0]  %s0, 512, %s19, [#allocation3], 128, 128, 8
    $region5: #{tpu_custom_call.1} parent=1 // pred_fallthru
      _
    // Predicated region
    $region6: #{tpu_custom_call.1} parent=1 // pred_check
      _
    $region7: #{tpu_custom_call.1} parent=1 // pred_check_branch
      %26 = sbr.rel (0) target = $region9
    $region8: #{tpu_custom_call.1} parent=1 // pred_region
      %s28 = ssub.s32 2048, 2048
      %29 = vsyncadd [#allocation6], %s28
      %s30 = sshll.u32 [#allocation5], 4
      %s31 = int_to_ptr.vmem [resolvable:$true] %s30
      %36 = dma.hbm_to_vmem [thread:$0]  %s1, 2048, %s31, [#allocation6], 128, 128, 8
    $region9: #{tpu_custom_call.1} parent=1 // pred_fallthru
      _
    // Predicated region
    $region10: #{tpu_custom_call.1} parent=1 // pred_check
      _
    $region11: #{tpu_custom_call.1} parent=1 // pred_check_branch
      %38 = sbr.rel (0) target = $region13
    $region12: #{tpu_custom_call.1} parent=1 // pred_region
      _
    $region13: #{tpu_custom_call.1} parent=1 // pred_fallthru
      _
    // Predicated region
    $region14: #{tpu_custom_call.1} parent=1 // pred_check
      _
    $region15: #{tpu_custom_call.1} parent=1 // pred_check_branch
      %40 = sbr.rel (0) target = $region17
    $region16: #{tpu_custom_call.1} parent=1 // pred_region
      %s42 = ssub.s32 2048, 2048
      %43 = vsyncadd [#allocation6], %s42
      %s44 = sshll.u32 [#allocation7], 4
      %s45 = int_to_ptr.vmem [resolvable:$true] %s44
      %50 = dma.hbm_to_vmem [thread:$0]  %s3, 2048, %s45, [#allocation6], 64, 64, 4
    $region17: #{tpu_custom_call.1} parent=1 // pred_fallthru
      _
    // Predicated region
    $region18: #{tpu_custom_call.1} parent=1 // pred_check
      _
    $region19: #{tpu_custom_call.1} parent=1 // pred_check_branch
      %52 = sbr.rel (0) target = $region21
    $region20: #{tpu_custom_call.1} parent=1 // pred_region
      _
    $region21: #{tpu_custom_call.1} parent=1 // pred_fallthru
      _
    // Predicated region
    $region22: #{tpu_custom_call.1} parent=1 // pred_check
      _
    $region23: #{tpu_custom_call.1} parent=1 // pred_check_branch
      %54 = sbr.rel (0) target = $region25
    $region24: #{tpu_custom_call.1} parent=1 // pred_region
      %55 = dma.done [#allocation3], 512
    $region25: #{tpu_custom_call.1} parent=1 // pred_fallthru
      _
    // Predicated region
    $region26: #{tpu_custom_call.1} parent=1 // pred_check
      _
    $region27: #{tpu_custom_call.1} parent=1 // pred_check_branch
      %57 = sbr.rel (0) target = $region29
    $region28: #{tpu_custom_call.1} parent=1 // pred_region
      %58 = dma.done [#allocation6], 2048
    $region29: #{tpu_custom_call.1} parent=1 // pred_fallthru
      _
    // Predicated region
    $region30: #{tpu_custom_call.1} parent=1 // pred_check
      _
    $region31: #{tpu_custom_call.1} parent=1 // pred_check_branch
      %60 = sbr.rel (0) target = $region33
    $region32: #{tpu_custom_call.1} parent=1 // pred_region
      %61 = dma.done [#allocation6], 2048
    $region33: #{tpu_custom_call.1} parent=1 // pred_fallthru
      _
    %v63 = vld [vmem:[#allocation2] sm:$0xff]
    %v64 = vld [vmem:[#allocation2 + $0x8] sm:$0xff]
    %v65 = vld [vmem:[#allocation2 + $0x10] sm:$0xff]
    %v66 = vld [vmem:[#allocation2 + $0x18] sm:$0xff]
    %v67 = vpack.c.bf16 %v64, %v63
    %v68 = vpack.c.bf16 %v66, %v65
    %v69 = vld [vmem:[#allocation5] sm:$0xff]
    %v70 = vld [vmem:[#allocation5 + $0x8] sm:$0xff]
    %v71 = vld [vmem:[#allocation5 + $0x10] sm:$0xff]
    %v72 = vld [vmem:[#allocation5 + $0x18] sm:$0xff]
    %v73 = vld [vmem:[#allocation5 + $0x20] sm:$0xff]
    %v74 = vld [vmem:[#allocation5 + $0x28] sm:$0xff]
    %v75 = vld [vmem:[#allocation5 + $0x30] sm:$0xff]
    %v76 = vld [vmem:[#allocation5 + $0x38] sm:$0xff]
    %v77 = vld [vmem:[#allocation5 + $0x40] sm:$0xff]
    %v78 = vld [vmem:[#allocation5 + $0x48] sm:$0xff]
    %v79 = vld [vmem:[#allocation5 + $0x50] sm:$0xff]
    %v80 = vld [vmem:[#allocation5 + $0x58] sm:$0xff]
    %v81 = vld [vmem:[#allocation5 + $0x60] sm:$0xff]
    %v82 = vld [vmem:[#allocation5 + $0x68] sm:$0xff]
    %v83 = vld [vmem:[#allocation5 + $0x70] sm:$0xff]
    %v84 = vld [vmem:[#allocation5 + $0x78] sm:$0xff]
    %v85 = vld [vmem:[%s2] sm:$0x3]
    %v87 = vlaneseq
    %v88 = vshrl.u32 %v87, 7
    %v89 = vsub.s32 0, %v88
    %v90 = vrot.slane %v85, %v89
    %v91 = vlaneseq
    %v92 = vshrl.u32 %v91, 7
    %v93 = vsub.s32 1, %v92
    %v94 = vrot.slane %v85, %v93
    %v113 = vunpack.c.l.b16 %v69
    %v114 = vunpack.c.h.b16 %v69
    %v115 = vunpack.c.l.b16 %v70
    %v116 = vunpack.c.h.b16 %v70
    %v117 = vunpack.c.l.b16 %v71
    %v118 = vunpack.c.h.b16 %v71
    %v119 = vunpack.c.l.b16 %v72
    %v120 = vunpack.c.h.b16 %v72
    %v121 = vunpack.c.l.b16 %v73
    %v122 = vunpack.c.h.b16 %v73
    %v123 = vunpack.c.l.b16 %v74
    %v124 = vunpack.c.h.b16 %v74
    %v125 = vunpack.c.l.b16 %v75
    %v126 = vunpack.c.h.b16 %v75
    %v127 = vunpack.c.l.b16 %v76
    %v128 = vunpack.c.h.b16 %v76
    %v129 = vunpack.c.l.b16 %v77
    %v130 = vunpack.c.h.b16 %v77
    %v131 = vunpack.c.l.b16 %v78
    %v132 = vunpack.c.h.b16 %v78
    %v133 = vunpack.c.l.b16 %v79
    %v134 = vunpack.c.h.b16 %v79
    %v135 = vunpack.c.l.b16 %v80
    %v136 = vunpack.c.h.b16 %v80
    %v137 = vunpack.c.l.b16 %v81
    %v138 = vunpack.c.h.b16 %v81
    %v139 = vunpack.c.l.b16 %v82
    %v140 = vunpack.c.h.b16 %v82
    %v141 = vunpack.c.l.b16 %v83
    %v142 = vunpack.c.h.b16 %v83
    %v143 = vunpack.c.l.b16 %v84
    %v144 = vunpack.c.h.b16 %v84
    %v145 = vpack.c.b16 %v115, %v113
    %v146 = vpack.c.b16 %v116, %v114
    %v147 = vpack.c.b16 %v119, %v117
    %v148 = vpack.c.b16 %v120, %v118
    %v149 = vpack.c.b16 %v123, %v121
    %v150 = vpack.c.b16 %v124, %v122
    %v151 = vpack.c.b16 %v127, %v125
    %v152 = vpack.c.b16 %v128, %v126
    %v153 = vpack.c.b16 %v131, %v129
    %v154 = vpack.c.b16 %v132, %v130
    %v155 = vpack.c.b16 %v135, %v133
    %v156 = vpack.c.b16 %v136, %v134
    %v157 = vpack.c.b16 %v139, %v137
    %v158 = vpack.c.b16 %v140, %v138
    %v159 = vpack.c.b16 %v143, %v141
    %v160 = vpack.c.b16 %v144, %v142
    %177 = vmatprep.subr.bf16.mxu0 %v160
    %178 = vmatpush1.bf16.msra.mxu0 %v159
    %179 = vmatprep.subr.bf16.mxu0 %v158
    %180 = vmatpush1.bf16.msra.mxu0 %v157
    %181 = vmatprep.subr.bf16.mxu0 %v156
    %182 = vmatpush1.bf16.msra.mxu0 %v155
    %183 = vmatprep.subr.bf16.mxu0 %v154
    %184 = vmatpush1.bf16.msra.mxu0 %v153
    %185 = vmatprep.subr.bf16.mxu0 %v152
    %186 = vmatpush1.bf16.msra.mxu0 %v151
    %187 = vmatprep.subr.bf16.mxu0 %v150
    %188 = vmatpush1.bf16.msra.mxu0 %v149
    %189 = vmatprep.subr.bf16.mxu0 %v148
    %190 = vmatpush1.bf16.msra.mxu0 %v147
    %191 = vmatprep.subr.bf16.mxu0 %v146
    %192 = vmatpush1.bf16.msra.mxu0 %v145
    %193 = vmatprep.subr.bf16.mxu0 0
    %194 = vmatpush2.bf16.msra.mxu0 0
    %195 = vmatprep.subr.bf16.mxu0 0
    %196 = vmatpush2.bf16.msra.mxu0 0
    %197 = vmatprep.subr.bf16.mxu0 0
    %198 = vmatpush2.bf16.msra.mxu0 0
    %199 = vmatprep.subr.bf16.mxu0 0
    %200 = vmatpush2.bf16.msra.mxu0 0
    %201 = vmatprep.subr.bf16.mxu0 0
    %202 = vmatpush2.bf16.msra.mxu0 0
    %203 = vmatprep.subr.bf16.mxu0 0
    %204 = vmatpush2.bf16.msra.mxu0 0
    %205 = vmatprep.subr.bf16.mxu0 0
    %206 = vmatpush2.bf16.msra.mxu0 0
    %207 = vmatprep.subr.bf16.mxu0 0
    %208 = vmatpush2.bf16.msra.mxu0 0
    %209 = vmatprep.mubr.bf16.mxu0 0
    %210 = vmatmul.mubr.bf16.gmra.mxu0 %v67
    %v211 = vpop.f32.mrf.mxu0
    %v212 = vadd.f32 %v90, %v211
    %v213 = vpop.f32.mrf.mxu0
    %v214 = vadd.f32 %v94, %v213
    %v215 = vpop.f32.mrf.mxu0
    %v216 = vadd.f32 %v90, %v215
    %v217 = vpop.f32.mrf.mxu0
    %v218 = vadd.f32 %v94, %v217
    %219 = vmatprep.mubr.bf16.mxu0 0
    %220 = vmatmul.mubr.bf16.gmra.mxu0 %v68
    %v221 = vpop.f32.mrf.mxu0
    %v222 = vadd.f32 %v90, %v221
    %v223 = vpop.f32.mrf.mxu0
    %v224 = vadd.f32 %v94, %v223
    %v225 = vpop.f32.mrf.mxu0
    %v226 = vadd.f32 %v90, %v225
    %v227 = vpop.f32.mrf.mxu0
    %v228 = vadd.f32 %v94, %v227
    %229 = vdwg.mxu0
    %v230 = vmul.f32 %v212, 0.5
    %v231 = vmul.f32 %v214, 0.5
    %v232 = vmul.f32 %v216, 0.5
    %v233 = vmul.f32 %v218, 0.5
    %v234 = vmul.f32 %v222, 0.5
    %v235 = vmul.f32 %v224, 0.5
    %v236 = vmul.f32 %v226, 0.5
    %v237 = vmul.f32 %v228, 0.5
    %v238 = vmul.f32 %v212, 0.70710677
    %v239 = vmul.f32 %v214, 0.70710677
    %v240 = vmul.f32 %v216, 0.70710677
    %v241 = vmul.f32 %v218, 0.70710677
    %v242 = vmul.f32 %v222, 0.70710677
    %v243 = vmul.f32 %v224, 0.70710677
    %v244 = vmul.f32 %v226, 0.70710677
    %v245 = vmul.f32 %v228, 0.70710677
    %v246 = verf.f32.pop %v238
    %v247 = verf.f32.pop %v239
    %v248 = verf.f32.pop %v240
    %v249 = verf.f32.pop %v241
    %v250 = verf.f32.pop %v242
    %v251 = verf.f32.pop %v243
    %v252 = verf.f32.pop %v244
    %v253 = verf.f32.pop %v245
    %v254 = vadd.f32 %v246, 1.0
    %v255 = vadd.f32 %v247, 1.0
    %v256 = vadd.f32 %v248, 1.0
    %v257 = vadd.f32 %v249, 1.0
    %v258 = vadd.f32 %v250, 1.0
    %v259 = vadd.f32 %v251, 1.0
    %v260 = vadd.f32 %v252, 1.0
    %v261 = vadd.f32 %v253, 1.0
    %v262 = vmul.f32 %v230, %v254
    %v263 = vmul.f32 %v231, %v255
    %v264 = vmul.f32 %v232, %v256
    %v265 = vmul.f32 %v233, %v257
    %v266 = vmul.f32 %v234, %v258
    %v267 = vmul.f32 %v235, %v259
    %v268 = vmul.f32 %v236, %v260
    %v269 = vmul.f32 %v237, %v261
    %v270 = vpack.c.bf16 %v264, %v262
    %v271 = vpack.c.bf16 %v265, %v263
    %v272 = vpack.c.bf16 %v268, %v266
    %v273 = vpack.c.bf16 %v269, %v267
    %v274 = vld [vmem:[#allocation7] sm:$0xf]
    %v275 = vld [vmem:[#allocation7 + $0x4] sm:$0xf]
    %v276 = vld [vmem:[#allocation7 + $0x8] sm:$0xf]
    %v277 = vld [vmem:[#allocation7 + $0xc] sm:$0xf]
    %v278 = vld [vmem:[#allocation7 + $0x10] sm:$0xf]
    %v279 = vld [vmem:[#allocation7 + $0x14] sm:$0xf]
    %v280 = vld [vmem:[#allocation7 + $0x18] sm:$0xf]
    %v281 = vld [vmem:[#allocation7 + $0x1c] sm:$0xf]
    %v282 = vld [vmem:[#allocation7 + $0x20] sm:$0xf]
    %v283 = vld [vmem:[#allocation7 + $0x24] sm:$0xf]
    %v284 = vld [vmem:[#allocation7 + $0x28] sm:$0xf]
    %v285 = vld [vmem:[#allocation7 + $0x2c] sm:$0xf]
    %v286 = vld [vmem:[#allocation7 + $0x30] sm:$0xf]
    %v287 = vld [vmem:[#allocation7 + $0x34] sm:$0xf]
    %v288 = vld [vmem:[#allocation7 + $0x38] sm:$0xf]
    %v289 = vld [vmem:[#allocation7 + $0x3c] sm:$0xf]
    %v290 = vld [vmem:[#allocation7 + $0x40] sm:$0xf]
    %v291 = vld [vmem:[#allocation7 + $0x44] sm:$0xf]
    %v292 = vld [vmem:[#allocation7 + $0x48] sm:$0xf]
    %v293 = vld [vmem:[#allocation7 + $0x4c] sm:$0xf]
    %v294 = vld [vmem:[#allocation7 + $0x50] sm:$0xf]
    %v295 = vld [vmem:[#allocation7 + $0x54] sm:$0xf]
    %v296 = vld [vmem:[#allocation7 + $0x58] sm:$0xf]
    %v297 = vld [vmem:[#allocation7 + $0x5c] sm:$0xf]
    %v298 = vld [vmem:[#allocation7 + $0x60] sm:$0xf]
    %v299 = vld [vmem:[#allocation7 + $0x64] sm:$0xf]
    %v300 = vld [vmem:[#allocation7 + $0x68] sm:$0xf]
    %v301 = vld [vmem:[#allocation7 + $0x6c] sm:$0xf]
    %v302 = vld [vmem:[#allocation7 + $0x70] sm:$0xf]
    %v303 = vld [vmem:[#allocation7 + $0x74] sm:$0xf]
    %v304 = vld [vmem:[#allocation7 + $0x78] sm:$0xf]
    %v305 = vld [vmem:[#allocation7 + $0x7c] sm:$0xf]
    %v306 = vld [vmem:[%s4] sm:$0x1]
    %v308 = vlaneseq
    %v309 = vshrl.u32 %v308, 7
    %v310 = vsub.s32 0, %v309
    %v311 = vrot.slane %v306, %v310
    %v345 = vunpack.c.l.b16 %v274
    %v346 = vunpack.c.l.b16 %v275
    %v347 = vunpack.c.l.b16 %v276
    %v348 = vunpack.c.l.b16 %v277
    %v349 = vunpack.c.l.b16 %v278
    %v350 = vunpack.c.l.b16 %v279
    %v351 = vunpack.c.l.b16 %v280
    %v352 = vunpack.c.l.b16 %v281
    %v353 = vunpack.c.l.b16 %v282
    %v354 = vunpack.c.l.b16 %v283
    %v355 = vunpack.c.l.b16 %v284
    %v356 = vunpack.c.l.b16 %v285
    %v357 = vunpack.c.l.b16 %v286
    %v358 = vunpack.c.l.b16 %v287
    %v359 = vunpack.c.l.b16 %v288
    %v360 = vunpack.c.l.b16 %v289
    %v361 = vunpack.c.l.b16 %v290
    %v362 = vunpack.c.l.b16 %v291
    %v363 = vunpack.c.l.b16 %v292
    %v364 = vunpack.c.l.b16 %v293
    %v365 = vunpack.c.l.b16 %v294
    %v366 = vunpack.c.l.b16 %v295
    %v367 = vunpack.c.l.b16 %v296
    %v368 = vunpack.c.l.b16 %v297
    %v369 = vunpack.c.l.b16 %v298
    %v370 = vunpack.c.l.b16 %v299
    %v371 = vunpack.c.l.b16 %v300
    %v372 = vunpack.c.l.b16 %v301
    %v373 = vunpack.c.l.b16 %v302
    %v374 = vunpack.c.l.b16 %v303
    %v375 = vunpack.c.l.b16 %v304
    %v376 = vunpack.c.l.b16 %v305
    %v377 = vpack.c.b16 %v346, %v345
    %v378 = vpack.c.b16 %v348, %v347
    %v379 = vpack.c.b16 %v350, %v349
    %v380 = vpack.c.b16 %v352, %v351
    %v381 = vpack.c.b16 %v354, %v353
    %v382 = vpack.c.b16 %v356, %v355
    %v383 = vpack.c.b16 %v358, %v357
    %v384 = vpack.c.b16 %v360, %v359
    %v385 = vpack.c.b16 %v362, %v361
    %v386 = vpack.c.b16 %v364, %v363
    %v387 = vpack.c.b16 %v366, %v365
    %v388 = vpack.c.b16 %v368, %v367
    %v389 = vpack.c.b16 %v370, %v369
    %v390 = vpack.c.b16 %v372, %v371
    %v391 = vpack.c.b16 %v374, %v373
    %v392 = vpack.c.b16 %v376, %v375
    %409 = vmatprep.subr.bf16.mxu0 0
    %410 = vmatpush1.bf16.msra.mxu0 %v384
    %411 = vmatprep.subr.bf16.mxu0 0
    %412 = vmatpush1.bf16.msra.mxu0 %v383
    %413 = vmatprep.subr.bf16.mxu0 0
    %414 = vmatpush1.bf16.msra.mxu0 %v382
    %415 = vmatprep.subr.bf16.mxu0 0
    %416 = vmatpush1.bf16.msra.mxu0 %v381
    %417 = vmatprep.subr.bf16.mxu0 0
    %418 = vmatpush1.bf16.msra.mxu0 %v380
    %419 = vmatprep.subr.bf16.mxu0 0
    %420 = vmatpush1.bf16.msra.mxu0 %v379
    %421 = vmatprep.subr.bf16.mxu0 0
    %422 = vmatpush1.bf16.msra.mxu0 %v378
    %423 = vmatprep.subr.bf16.mxu0 0
    %424 = vmatpush1.bf16.msra.mxu0 %v377
    %425 = vmatprep.subr.bf16.mxu0 0
    %426 = vmatpush2.bf16.msra.mxu0 %v392
    %427 = vmatprep.subr.bf16.mxu0 0
    %428 = vmatpush2.bf16.msra.mxu0 %v391
    %429 = vmatprep.subr.bf16.mxu0 0
    %430 = vmatpush2.bf16.msra.mxu0 %v390
    %431 = vmatprep.subr.bf16.mxu0 0
    %432 = vmatpush2.bf16.msra.mxu0 %v389
    %433 = vmatprep.subr.bf16.mxu0 0
    %434 = vmatpush2.bf16.msra.mxu0 %v388
    %435 = vmatprep.subr.bf16.mxu0 0
    %436 = vmatpush2.bf16.msra.mxu0 %v387
    %437 = vmatprep.subr.bf16.mxu0 0
    %438 = vmatpush2.bf16.msra.mxu0 %v386
    %439 = vmatprep.subr.bf16.mxu0 0
    %440 = vmatpush2.bf16.msra.mxu0 %v385
    %441 = vmatprep.mubr.bf16.mxu0 %v271
    %442 = vmatmul.mubr.bf16.gmra.mxu0 %v270
    %v443 = vpop.f32.mrf.mxu0
    %v444 = vadd.f32 %v311, %v443
    %v445 = vpop.f32.mrf.mxu0
    %v446 = vpop.f32.mrf.mxu0
    %v447 = vadd.f32 %v311, %v446
    %v448 = vpop.f32.mrf.mxu0
    %449 = vmatprep.mubr.bf16.mxu0 %v273
    %450 = vmatmul.mubr.bf16.gmra.mxu0 %v272
    %v451 = vpop.f32.mrf.mxu0
    %v452 = vadd.f32 %v311, %v451
    %v453 = vpop.f32.mrf.mxu0
    %v454 = vpop.f32.mrf.mxu0
    %v455 = vadd.f32 %v311, %v454
    %v456 = vpop.f32.mrf.mxu0
    %457 = vdwg.mxu0
    %458 = vst [vmem:[#allocation8] sm:$0xff] %v444
    %459 = vst [vmem:[#allocation8 + $0x8] sm:$0xff] %v447
    %460 = vst [vmem:[#allocation8 + $0x10] sm:$0xff] %v452
    %461 = vst [vmem:[#allocation8 + $0x18] sm:$0xff] %v455
    // Predicated region
    $region34: #{tpu_custom_call.1} parent=1 // pred_check
      _
    $region35: #{tpu_custom_call.1} parent=1 // pred_check_branch
      %463 = sbr.rel (0) target = $region37
    $region36: #{tpu_custom_call.1} parent=1 // pred_region
      %s465 = ssub.s32 512, 512
      %466 = vsyncadd [#allocation4], %s465
      %s467 = sshll.u32 [#allocation8], 4
      %s468 = int_to_ptr.vmem [resolvable:$true] %s467
      %473 = dma.vmem_to_hbm [thread:$0]  %s468, 512, %s5, [#allocation4], 128, 128, 8
    $region37: #{tpu_custom_call.1} parent=1 // pred_fallthru
      _
    // Predicated region
    $region38: #{tpu_custom_call.1} parent=1 // pred_check
      _
    $region39: #{tpu_custom_call.1} parent=1 // pred_check_branch
      %475 = sbr.rel (0) target = $region41
    $region40: #{tpu_custom_call.1} parent=1 // pred_region
      %476 = dma.done [#allocation4], 512
    $region41: #{tpu_custom_call.1} parent=1 // pred_fallthru
      _
    %477 = vsyncpa [#allocation3], 1
    %478 = vsyncpa [#allocation6], 1
    %479 = vsyncpa [#allocation4], 1

</llo_original>
